<compile_context>
chip_gen: v6e
topology: v6e:2x2x1
jax: 0.10.0
libtpu: 0.0.40
codegen_flags: <defaults>
</compile_context>

<pallas_src>
import numpy as np
import jax
import jax.numpy as jnp
from jax.experimental import pallas as pl
from jax.experimental.pallas import tpu as pltpu


# ---------------------------------------------------------------------------
# Pallas kernel: one lane-dense tile of  Y = W @ X2
#   w_ref: (S, S)        resident in VMEM (constant block index)
#   x_ref: (S, TILE_N)   current lane tile of X2 = (S, B*C)
#   o_ref: (S, TILE_N)
# ---------------------------------------------------------------------------
def _apply_kernel(w_ref, x_ref, o_ref):
    o_ref[...] = jnp.dot(w_ref[...], x_ref[...],
                         preferred_element_type=jnp.float32).astype(o_ref.dtype)


def _calc_weight(params):
    """W = P @ (L*l_mask + I) @ (U*u_mask + diag(s_sign*exp(w_s))), in f32."""
    l = params["w_l"] * params["l_mask"] + params["l_eye"]
    u = params["w_u"] * params["u_mask"] + jnp.diag(
        params["s_sign"] * jnp.exp(params["w_s"]))
    return (params["w_p"] @ l @ u).astype(jnp.float32)


def _pick_tile_n(S, N, itemsize):
    """Largest lane tile (multiple of 128) that divides N and keeps the
    double-buffered in+out blocks under ~20 MiB (headroom on v5e/v6e/v7x)."""
    budget = 20 * 1024 * 1024
    for cand in (2048, 1024, 512, 256, 128):
        if N % cand == 0 and 2 * 2 * S * cand * itemsize <= budget:
            return cand
    return N  # small / irregular N: single full-width block (== full dim is legal)


def inv_conv1d_lu_forward(x, params, compute_dtype=None):
    """Equivalent of InvConv1dLU.forward for x of shape (B, S, C)."""
    B, S, C = x.shape
    out_dtype = x.dtype
    cdt = jnp.dtype(compute_dtype) if compute_dtype is not None else x.dtype

    # Weight math stays f32; cast only the final W to the compute dtype.
    weight = _calc_weight(params).astype(cdt)

    # Lane-dense layout: contraction axis S leading, flattened B*C on lanes.
    x2 = jnp.transpose(x, (1, 0, 2)).reshape(S, B * C).astype(cdt)

    N = B * C
    tile_n = _pick_tile_n(S, N, jnp.dtype(cdt).itemsize)
    grid = (N // tile_n,)

    y2 = pl.pallas_call(
        _apply_kernel,
        out_shape=jax.ShapeDtypeStruct((S, N), out_dtype),
        grid=grid,
        in_specs=[
            pl.BlockSpec((S, S), lambda n: (0, 0)),        # weight, VMEM-resident
            pl.BlockSpec((S, tile_n), lambda n: (0, n)),   # x tile
        ],
        out_specs=pl.BlockSpec((S, tile_n), lambda n: (0, n)),
        compiler_params=pltpu.CompilerParams(
            dimension_semantics=("parallel",),
            vmem_limit_bytes=32 * 1024 * 1024),
    )(weight, x2)

    # (S, B*C) -> (B, S, C)
    return jnp.transpose(y2.reshape(S, B, C), (1, 0, 2))


# ---------------------------------------------------------------------------
# Deterministic parameter construction mirroring InvConv1dLU.__init__
# (numpy QR + LU decomposition; no checkpoint loading).
# ---------------------------------------------------------------------------
def make_params(in_seq, seed=0):
    rng = np.random.RandomState(seed)
    w = rng.randn(in_seq, in_seq)
    q, _ = np.linalg.qr(w)
    q = q.astype(np.float32)
    w_p, w_l, w_u_full = jax.scipy.linalg.lu(jnp.asarray(q))
    w_s = jnp.diag(w_u_full)
    w_u = jnp.triu(w_u_full, 1)
    u_mask = jnp.triu(jnp.ones_like(w_u), 1)
    l_mask = u_mask.T
    return dict(
        w_p=w_p.astype(jnp.float32),
        w_l=w_l.astype(jnp.float32),
        w_u=w_u.astype(jnp.float32),
        w_s=jnp.log(jnp.abs(w_s)).astype(jnp.float32),   # logabs(w_s)
        s_sign=jnp.sign(w_s).astype(jnp.float32),
        u_mask=u_mask.astype(jnp.float32),
        l_mask=l_mask.astype(jnp.float32),
        l_eye=jnp.eye(in_seq, dtype=jnp.float32),
    )


def _reference_forward(x, params):
    w = _calc_weight(params)
    return jnp.einsum("ts,bsc->btc", w, x)


if __name__ == "__main__":
    # Shapes consistent with the module: batch=2, in_seq=16, channels=32.
    B, S, C = 2, 16, 32
    params = make_params(S, seed=0)

    x = jax.random.normal(jax.random.PRNGKey(0), (B, S, C), dtype=jnp.float32)
    out = jax.block_until_ready(inv_conv1d_lu_forward(x, params))
    ref = _reference_forward(x, params)
    np.testing.assert_allclose(np.asarray(out), np.asarray(ref),
                               rtol=1e-5, atol=1e-5)

    # Larger B*C exercises the lane-dense multi-step grid path (N=4096, tile=2048).
    B2, C2 = 16, 256
    xl = jax.random.normal(jax.random.PRNGKey(1), (B2, S, C2), dtype=jnp.float32)
    outl = jax.block_until_ready(inv_conv1d_lu_forward(xl, params))
    refl = _reference_forward(xl, params)
    np.testing.assert_allclose(np.asarray(outl), np.asarray(refl),
                               rtol=1e-5, atol=1e-5)

    print("KERNEL_OK")
</pallas_src>

<mosaic_0001>
module attributes {stable_mosaic.version = 11 : i64} {
  func.func @_apply_kernel(%arg0: i32, %arg1: memref<16x16xf32, #tpu.memory_space<vmem>>, %arg2: memref<16x64xf32, #tpu.memory_space<vmem>>, %arg3: memref<16x64xf32, #tpu.memory_space<vmem>>) attributes {dimension_semantics = [#tpu.dimension_semantics<parallel>], iteration_bounds = array<i64: 1>, scalar_prefetch = 0 : i64, scratch_operands = 0 : i64, tpu.core_type = #tpu.core_type<tc>, window_params = [{pipeline_mode = #tpu.pipeline_mode<synchronous>, transform_indices = @transform_0, window_bounds = array<i64: 16, 16>}, {transform_indices = @transform_1, window_bounds = array<i64: 16, 64>}, {transform_indices = @transform_2, window_bounds = array<i64: 16, 64>}]} {
    %c0 = arith.constant 0 : index
    %c0_0 = arith.constant 0 : index
    %0 = vector.load %arg1[%c0, %c0_0] : memref<16x16xf32, #tpu.memory_space<vmem>>, vector<16x16xf32>
    %c0_1 = arith.constant 0 : index
    %c0_2 = arith.constant 0 : index
    %1 = vector.load %arg2[%c0_1, %c0_2] : memref<16x64xf32, #tpu.memory_space<vmem>>, vector<16x64xf32>
    %cst = arith.constant dense<0.000000e+00> : vector<16x64xf32>
    %2 = tpu.matmul %0, %1, %cst {dimension_numbers = #tpu.dot_dimension_numbers<[1], [0], [0], [1], [0, 0, 1, 1], [], []>} : vector<16x16xf32>, vector<16x64xf32>, vector<16x64xf32> -> vector<16x64xf32>
    %c0_3 = arith.constant 0 : index
    %c0_4 = arith.constant 0 : index
    %3 = vector.load %arg3[%c0_3, %c0_4] : memref<16x64xf32, #tpu.memory_space<vmem>>, vector<16x64xf32>
    tpu.vector_store %arg3[%c0_3, %c0_4], %2 {strides = array<i32>} : memref<16x64xf32, #tpu.memory_space<vmem>>, vector<16x64xf32>,
    return
  }
  func.func @transform_0(%arg0: i32) -> (i32, i32) {
    %c0_i32 = arith.constant 0 : i32
    %c0_i32_0 = arith.constant 0 : i32
    %c0_i32_1 = arith.constant 0 : i32
    return %c0_i32, %c0_i32_0 : i32, i32
  }
  func.func @transform_1(%arg0: i32) -> (i32, i32) {
    %c0_i32 = arith.constant 0 : i32
    %c0_i32_0 = arith.constant 0 : i32
    return %c0_i32, %arg0 : i32, i32
  }
  func.func @transform_2(%arg0: i32) -> (i32, i32) {
    %c0_i32 = arith.constant 0 : i32
    %c0_i32_0 = arith.constant 0 : i32
    return %c0_i32, %arg0 : i32, i32
  }
}

</mosaic_0001>

<llo_original>
// kernel: tpu_custom_call.1
$region0: #{tpu_custom_call.1}
  #allocation0 [shape = 'u32[]', space=smem, size = 0x4, offset = 0x4, fixed_abs, tag = 'smem constant byte address 0x4 - core index']
  #allocation1 [shape = 'u32[144,128]{1,0:T(1,128)}', space=vmem, size = 0x12000, scoped, tag = 'internal scratch']
  %s0 = inlined_call_operand.hbm [shape: f32[16,16], index: 0, kind: input, shape index: {}]
  %s1 = inlined_call_operand.hbm [shape: f32[16,64], index: 1, kind: input, shape index: {}]
  %s2 = inlined_call_operand.hbm [shape: f32[16,64], index: 2, kind: output, shape index: {}]
  %s3 = sld [smem:[#allocation0]]
  $region26: #{tpu_custom_call.1} parent=0
    _
  %s5 = ssub.s32 1, %s3
  %s6 = scalar_select 0, %s5, %s3
  $region1: #{tpu_custom_call.1} parent=0
    #allocation2 [shape = 'u8[8192]{0}', space=vmem, size = 0x2000, scoped, tag = 'input window, operand 0, single buffered']
    #allocation3 [shape = 's32[1]{0}', space=sflag, size = 0x4, scoped, tag = 'scoped memory for tpu_custom_call.1']
    #allocation4 [shape = 's32[1]{0}', space=sflag, size = 0x4, scoped, tag = 'scoped memory for tpu_custom_call.1']
    #allocation5 [shape = 'u8[8192]{0}', space=vmem, size = 0x2000, scoped, tag = 'input window, operand 1, single buffered']
    #allocation6 [shape = 's32[1]{0}', space=sflag, size = 0x4, scoped, tag = 'scoped memory for tpu_custom_call.1']
    #allocation7 [shape = 'u8[8192]{0}', space=vmem, size = 0x2000, scoped, tag = 'output window, operand 0, single buffered']
    %7 = vsyncpa [#allocation3], 0
    %8 = vsyncpa [#allocation6], 0
    %9 = vsyncpa [#allocation4], 0
    // Predicated region
    $region2: #{tpu_custom_call.1} parent=1 // pred_check
      _
    $region3: #{tpu_custom_call.1} parent=1 // pred_check_branch
      %11 = sbr.rel (0) target = $region5
    $region4: #{tpu_custom_call.1} parent=1 // pred_region
      %s13 = ssub.s32 256, 256
      %14 = vsyncadd [#allocation3], %s13
      %s15 = sshll.u32 [#allocation2], 4
      %s16 = int_to_ptr.vmem [resolvable:$true] %s15
      %21 = dma.hbm_to_vmem [thread:$0]  %s0, 256, %s16, [#allocation3], 128, 128, 8
    $region5: #{tpu_custom_call.1} parent=1 // pred_fallthru
      _
    // Predicated region
    $region6: #{tpu_custom_call.1} parent=1 // pred_check
      _
    $region7: #{tpu_custom_call.1} parent=1 // pred_check_branch
      %23 = sbr.rel (0) target = $region9
    $region8: #{tpu_custom_call.1} parent=1 // pred_region
      %s25 = ssub.s32 256, 256
      %26 = vsyncadd [#allocation6], %s25
      %s27 = sshll.u32 [#allocation5], 4
      %s28 = int_to_ptr.vmem [resolvable:$true] %s27
      %33 = dma.hbm_to_vmem [thread:$0]  %s1, 256, %s28, [#allocation6], 128, 128, 8
    $region9: #{tpu_custom_call.1} parent=1 // pred_fallthru
      _
    // Predicated region
    $region10: #{tpu_custom_call.1} parent=1 // pred_check
      _
    $region11: #{tpu_custom_call.1} parent=1 // pred_check_branch
      %35 = sbr.rel (0) target = $region13
    $region12: #{tpu_custom_call.1} parent=1 // pred_region
      %36 = dma.done [#allocation3], 256
    $region13: #{tpu_custom_call.1} parent=1 // pred_fallthru
      _
    // Predicated region
    $region14: #{tpu_custom_call.1} parent=1 // pred_check
      _
    $region15: #{tpu_custom_call.1} parent=1 // pred_check_branch
      %38 = sbr.rel (0) target = $region17
    $region16: #{tpu_custom_call.1} parent=1 // pred_region
      %39 = dma.done [#allocation6], 256
    $region17: #{tpu_custom_call.1} parent=1 // pred_fallthru
      _
    %v40 = vld [vmem:[#allocation2] sm:$0xff]
    %v41 = vld [vmem:[#allocation2 + $0x8] sm:$0xff]
    %v42 = vld [vmem:[#allocation5] sm:$0xff]
    %v43 = vld [vmem:[#allocation5 + $0x8] sm:$0xff]
    %vm44 = vcmask 130048
    %v46 = vsel %vm44, %v40, 0
    %v49 = vsel %vm44, %v41, 0
    %51 = vmatprep.subr.mxu0 0.0
    %52 = vmatpush1.msra.mxu0 0.0
    %53 = vmatprep.subr.mxu0 0.0
    %54 = vmatpush1.msra.mxu0 0.0
    %55 = vmatprep.subr.mxu0 0.0
    %56 = vmatpush1.msra.mxu0 0.0
    %57 = vmatprep.subr.mxu0 0.0
    %58 = vmatpush1.msra.mxu0 0.0
    %59 = vmatprep.subr.mxu0 0.0
    %60 = vmatpush1.msra.mxu0 0.0
    %61 = vmatprep.subr.mxu0 0.0
    %62 = vmatpush1.msra.mxu0 0.0
    %63 = vmatprep.subr.mxu0 0.0
    %64 = vmatpush1.msra.mxu0 0.0
    %65 = vmatprep.subr.mxu0 0.0
    %66 = vmatpush1.msra.mxu0 0.0
    %67 = vmatprep.subr.mxu0 0.0
    %68 = vmatpush1.msra.mxu0 0.0
    %69 = vmatprep.subr.mxu0 0.0
    %70 = vmatpush1.msra.mxu0 0.0
    %71 = vmatprep.subr.mxu0 0.0
    %72 = vmatpush1.msra.mxu0 0.0
    %73 = vmatprep.subr.mxu0 0.0
    %74 = vmatpush1.msra.mxu0 0.0
    %75 = vmatprep.subr.mxu0 0.0
    %76 = vmatpush1.msra.mxu0 0.0
    %77 = vmatprep.subr.mxu0 0.0
    %78 = vmatpush1.msra.mxu0 0.0
    %79 = vmatprep.subr.mxu0 0.0
    %80 = vmatpush1.msra.mxu0 %v43
    %81 = vmatprep.subr.mxu0 0.0
    %82 = vmatpush1.msra.mxu0 %v42
    %83 = vmatprep.subr.mxu0 0.0
    %84 = vmatpush2.msra.mxu0 0.0
    %85 = vmatprep.subr.mxu0 0.0
    %86 = vmatpush2.msra.mxu0 0.0
    %87 = vmatprep.subr.mxu0 0.0
    %88 = vmatpush2.msra.mxu0 0.0
    %89 = vmatprep.subr.mxu0 0.0
    %90 = vmatpush2.msra.mxu0 0.0
    %91 = vmatprep.subr.mxu0 0.0
    %92 = vmatpush2.msra.mxu0 0.0
    %93 = vmatprep.subr.mxu0 0.0
    %94 = vmatpush2.msra.mxu0 0.0
    %95 = vmatprep.subr.mxu0 0.0
    %96 = vmatpush2.msra.mxu0 0.0
    %97 = vmatprep.subr.mxu0 0.0
    %98 = vmatpush2.msra.mxu0 0.0
    %99 = vmatprep.subr.mxu0 0.0
    %100 = vmatpush2.msra.mxu0 0.0
    %101 = vmatprep.subr.mxu0 0.0
    %102 = vmatpush2.msra.mxu0 0.0
    %103 = vmatprep.subr.mxu0 0.0
    %104 = vmatpush2.msra.mxu0 0.0
    %105 = vmatprep.subr.mxu0 0.0
    %106 = vmatpush2.msra.mxu0 0.0
    %107 = vmatprep.subr.mxu0 0.0
    %108 = vmatpush2.msra.mxu0 0.0
    %109 = vmatprep.subr.mxu0 0.0
    %110 = vmatpush2.msra.mxu0 0.0
    %111 = vmatprep.subr.mxu0 0.0
    %112 = vmatpush2.msra.mxu0 0.0
    %113 = vmatprep.subr.mxu0 0.0
    %114 = vmatpush2.msra.mxu0 0.0
    %115 = vmatprep.mubr.f32.mxu0 0.0
    %116 = vmatmul.mubr.f32.gmra.mxu0 %v46
    %v117 = vpop.f32.mrf.mxu0
    %v118 = vadd.f32 0.0, %v117
    %v119 = vpop.f32.mrf.mxu0
    %120 = vmatprep.mubr.f32.mxu0 0.0
    %121 = vmatmul.mubr.f32.gmra.mxu0 %v49
    %v122 = vpop.f32.mrf.mxu0
    %v123 = vadd.f32 0.0, %v122
    %v124 = vpop.f32.mrf.mxu0
    %125 = vdwg.mxu0
    %vm126 = vcmask 523264
    %127 = vst.msk [vmem:[#allocation7] sm:$0xff] %vm126, %v118
    %128 = vst.msk [vmem:[#allocation7 + $0x8] sm:$0xff] %vm126, %v123
    // Predicated region
    $region18: #{tpu_custom_call.1} parent=1 // pred_check
      _
    $region19: #{tpu_custom_call.1} parent=1 // pred_check_branch
      %130 = sbr.rel (0) target = $region21
    $region20: #{tpu_custom_call.1} parent=1 // pred_region
      %s132 = ssub.s32 256, 256
      %133 = vsyncadd [#allocation4], %s132
      %s134 = sshll.u32 [#allocation7], 4
      %s135 = int_to_ptr.vmem [resolvable:$true] %s134
      %140 = dma.vmem_to_hbm [thread:$0]  %s135, 256, %s2, [#allocation4], 128, 128, 8
    $region21: #{tpu_custom_call.1} parent=1 // pred_fallthru
      _
    // Predicated region
    $region22: #{tpu_custom_call.1} parent=1 // pred_check
      _
    $region23: #{tpu_custom_call.1} parent=1 // pred_check_branch
      %142 = sbr.rel (0) target = $region25
    $region24: #{tpu_custom_call.1} parent=1 // pred_region
      %143 = dma.done [#allocation4], 256
    $region25: #{tpu_custom_call.1} parent=1 // pred_fallthru
      _
    %144 = vsyncpa [#allocation3], 1
    %145 = vsyncpa [#allocation6], 1
    %146 = vsyncpa [#allocation4], 1

</llo_original>
